<compile_context>
chip_gen: v7x
topology: tpu7x:2x2x1
jax: 0.10.0
libtpu: 0.0.40
codegen_flags: <defaults>
</compile_context>

<pallas_src>
import jax
import jax.numpy as jnp
from jax import lax
from jax.experimental import pallas as pl
from jax.experimental.pallas import tpu as pltpu


# ---------------------------------------------------------------------------
# Pallas kernels
# ---------------------------------------------------------------------------

def _lstm_layer_kernel(x_ref, zx_ref, zh_ref,
                       wx_ref, bx_ref, uh_ref, bh_ref,
                       h0_ref, c0_ref,
                       hn_ref, hT_ref, cT_ref):
    """One StochasticLSTMCell layer (full time recurrence) for one batch tile.

    Block shapes (TB = batch tile):
      x: (T, TB, D)   zx: (4, TB, D)   zh: (4, TB, H)
      wx: (4, D, H)   bx: (4, 1, H)    uh: (4, H, H)   bh: (4, 1, H)
      h0, c0: (TB, H) ; outputs hn: (T, TB, H), hT/cT: (TB, H)
    Gate order: i, f, o, g  (Wi/Wf/Wo/Wg, Ui/Uf/Uo/Ug).
    """
    T = x_ref.shape[0]

    def step(t, carry):
        h, c = carry
        x_t = x_ref[t]                                  # (TB, D), dynamic index on axis 0
        pre = []
        for g in range(4):                              # static unroll; each gate has its own mask
            xg = x_t * zx_ref[g]                        # concrete-dropout input mask
            hg = h * zh_ref[g]                          # concrete-dropout hidden mask
            pre.append(
                jnp.dot(xg, wx_ref[g], preferred_element_type=jnp.float32) + bx_ref[g]
                + jnp.dot(hg, uh_ref[g], preferred_element_type=jnp.float32) + bh_ref[g]
            )
        i_g = jax.nn.sigmoid(pre[0])
        f_g = jax.nn.sigmoid(pre[1])
        o_g = jax.nn.sigmoid(pre[2])
        g_g = jnp.tanh(pre[3])
        c_new = f_g * c + i_g * g_g
        h_new = o_g * jnp.tanh(c_new)
        hn_ref[t] = h_new.astype(hn_ref.dtype)          # dynamic store along time axis
        return (h_new, c_new)

    h_fin, c_fin = lax.fori_loop(0, T, step, (h0_ref[...], c0_ref[...]))
    hT_ref[...] = h_fin.astype(hT_ref.dtype)
    cT_ref[...] = c_fin.astype(cT_ref.dtype)


def _head_kernel(h_ref, w_ref, b_ref, mean_ref, logvar_ref):
    """Fused affine head: out = h @ W_head + b_head ; col0 = mean, col1 = clamp(log_var)."""
    out = jnp.dot(h_ref[...], w_ref[...], preferred_element_type=jnp.float32) + b_ref[...]
    mean_ref[...] = out[:, 0:1].astype(mean_ref.dtype)
    logvar_ref[...] = jnp.clip(out[:, 1:2], -10.0, 10.0).astype(logvar_ref.dtype)


# ---------------------------------------------------------------------------
# pallas_call wrappers
# ---------------------------------------------------------------------------

def _pick_batch_tile(B):
    # Whole batch for small B; otherwise tile the (parallel) batch axis so each grid
    # step's VMEM blocks stay modest and BlockSpec double-buffering overlaps HBM traffic.
    for tb in (512, 256, 128, 64, 32, 16, 8):
        if B >= tb and B % tb == 0:
            return tb
    return B


def lstm_layer_forward(x, zx, zh, lp, h0, c0):
    """Run one StochasticLSTMCell layer as a single Pallas kernel."""
    T, B, D = x.shape
    H = lp["uh"].shape[-1]
    TB = _pick_batch_tile(B)
    if B % TB != 0:
        TB = B
    grid = (B // TB,)

    batched3 = lambda i: (0, i, 0)     # tile the middle (batch) axis
    resident = lambda i: (0, 0, 0)     # weights/biases: same (whole-array) block each step
    state = lambda i: (i, 0)

    hn, hT, cT = pl.pallas_call(
        _lstm_layer_kernel,
        out_shape=(jax.ShapeDtypeStruct((T, B, H), jnp.float32),
                   jax.ShapeDtypeStruct((B, H), jnp.float32),
                   jax.ShapeDtypeStruct((B, H), jnp.float32)),
        grid=grid,
        in_specs=[
            pl.BlockSpec((T, TB, D), batched3),   # x
            pl.BlockSpec((4, TB, D), batched3),   # zx (input dropout masks, per gate)
            pl.BlockSpec((4, TB, H), batched3),   # zh (hidden dropout masks, per gate)
            pl.BlockSpec((4, D, H), resident),    # Wi/Wf/Wo/Wg stacked, stored (in, out)
            pl.BlockSpec((4, 1, H), resident),    # their biases
            pl.BlockSpec((4, H, H), resident),    # Ui/Uf/Uo/Ug stacked
            pl.BlockSpec((4, 1, H), resident),    # their biases
            pl.BlockSpec((TB, H), state),         # h0
            pl.BlockSpec((TB, H), state),         # c0
        ],
        out_specs=(
            pl.BlockSpec((T, TB, H), batched3),   # hn
            pl.BlockSpec((TB, H), state),         # h_T
            pl.BlockSpec((TB, H), state),         # c_T
        ),
        compiler_params=pltpu.CompilerParams(dimension_semantics=("parallel",)),
    )(x, zx, zh, lp["wx"], lp["bx"], lp["uh"], lp["bh"], h0, c0)
    return hn, hT, cT


def head_forward(h_last, w_head, b_head):
    B = h_last.shape[0]
    vmem = pl.BlockSpec(memory_space=pltpu.MemorySpace.VMEM)
    mean, logvar = pl.pallas_call(
        _head_kernel,
        out_shape=(jax.ShapeDtypeStruct((B, 1), jnp.float32),
                   jax.ShapeDtypeStruct((B, 1), jnp.float32)),
        in_specs=[vmem, vmem, vmem],
        out_specs=(vmem, vmem),
    )(h_last, w_head, b_head)
    return mean, logvar


# ---------------------------------------------------------------------------
# Parameters, masks, regularizer (wrapper-side glue)
# ---------------------------------------------------------------------------

def init_cell_params(key, input_size, hidden_size):
    """StochasticLSTMCell weights, all U[-1/sqrt(H), 1/sqrt(H)] like init_weights()."""
    k = 1.0 / float(hidden_size) ** 0.5
    keys = jax.random.split(key, 16)
    u = lambda kk, shape: jax.random.uniform(kk, shape, jnp.float32, -k, k)
    wx = jnp.stack([u(keys[i], (input_size, hidden_size)) for i in range(4)])       # (4, D, H)
    bx = jnp.stack([u(keys[4 + i], (1, hidden_size)) for i in range(4)])            # (4, 1, H)
    uh = jnp.stack([u(keys[8 + i], (hidden_size, hidden_size)) for i in range(4)])  # (4, H, H)
    bh = jnp.stack([u(keys[12 + i], (1, hidden_size)) for i in range(4)])           # (4, 1, H)
    return dict(wx=wx, bx=bx, uh=uh, bh=bh)


def init_params(key, num_features_df, value_embedding, hidden_size, num_layers):
    D = value_embedding + 1
    H = hidden_size
    H2 = H // 2
    k_emb, k_fc1, k_fcm, k_fcv, k_cells = jax.random.split(key, 5)

    emb = jax.random.normal(k_emb, (num_features_df + 1, value_embedding), jnp.float32)
    emb = emb.at[0].set(0.0)    # padding_idx = 0

    def linear(kk, fan_in, fan_out):
        kw, kb = jax.random.split(kk)
        bound = 1.0 / float(fan_in) ** 0.5
        w = jax.random.uniform(kw, (fan_in, fan_out), jnp.float32, -bound, bound)
        b = jax.random.uniform(kb, (1, fan_out), jnp.float32, -bound, bound)
        return w, b

    w1, b1 = linear(k_fc1, H, H2)
    wm, bm = linear(k_fcm, H2, 1)
    wv, bv = linear(k_fcv, H2, 1)

    layer_keys = jax.random.split(k_cells, num_layers)
    layers = [init_cell_params(layer_keys[li], D if li == 0 else H, H)
              for li in range(num_layers)]

    return dict(embedding=emb, layers=layers, w1=w1, b1=b1, wm=wm, bm=bm, wv=wv, bv=bv)


def sample_layer_masks(key, B, input_size, hidden_size, p):
    """Relaxed-Bernoulli (concrete dropout) masks, matching _sample_mask."""
    eps = 1e-7
    temp = 0.1
    kx, kh = jax.random.split(key)
    ux = jax.random.uniform(kx, (4, B, input_size), jnp.float32)
    uh = jax.random.uniform(kh, (4, B, hidden_size), jnp.float32)
    logit_u = lambda u: jnp.log(u + eps) - jnp.log(1.0 - u + eps)
    if input_size == 1:
        zx = 1.0 - jax.nn.sigmoid((jnp.log(eps) - jnp.log(1.0 + eps) + logit_u(ux)) / temp)
    else:
        zx = (1.0 - jax.nn.sigmoid(
            (jnp.log(p + eps) - jnp.log(1.0 - p + eps) + logit_u(ux)) / temp)) / (1.0 - p)
    zh = (1.0 - jax.nn.sigmoid(
        (jnp.log(p + eps) - jnp.log(1.0 - p + eps) + logit_u(uh)) / temp)) / (1.0 - p)
    return zx, zh


def rnn_regularizer(layers, p, wr=1e-5):
    """Net.regularizer(): parameter-only scalar (sum of cell weight/bias L2 terms)."""
    weight_sum = 0.0
    bias_sum = 0.0
    for lp in layers:
        weight_sum = weight_sum + (jnp.sum(lp["wx"] ** 2) + jnp.sum(lp["uh"] ** 2)) / (1.0 - p)
        bias_sum = bias_sum + jnp.sum(lp["bx"] ** 2) + jnp.sum(lp["bh"] ** 2)
    return wr * weight_sum + wr * bias_sum


# ---------------------------------------------------------------------------
# Net forward (Pallas) and pure-JAX reference
# ---------------------------------------------------------------------------

def net_forward(input_value, input_time, params, masks, p=0.2):
    # TODO(synk): embedding gather + feature concat/transpose are wrapper-side XLA glue
    # (data-dependent gather has no clean BlockSpec expression; sizes here are tiny).
    emb = jnp.take(params["embedding"], input_value, axis=0)                   # (B, T, E)
    combined = jnp.concatenate([emb, input_time[..., None].astype(jnp.float32)], axis=2)
    x = jnp.transpose(combined, (1, 0, 2))                                     # (T, B, D)

    B = x.shape[1]
    H = params["layers"][0]["uh"].shape[-1]

    h = jnp.zeros((B, H), jnp.float32)
    c = jnp.zeros((B, H), jnp.float32)
    outputs = x
    for lp, (zx, zh) in zip(params["layers"], masks):
        # StochasticLSTM feeds layer l's FINAL (h, c) as layer l+1's initial state.
        outputs, h, c = lstm_layer_forward(outputs, zx, zh, lp, h, c)
    h_last = h   # == hn[-1] of the last layer

    # fc1 -> {fc_mean, fc_log_var} is purely affine in forward(); collapse to one (H, 2) map.
    wmv = jnp.concatenate([params["wm"], params["wv"]], axis=1)                # (H/2, 2)
    bmv = jnp.concatenate([params["bm"], params["bv"]], axis=1)                # (1, 2)
    w_head = params["w1"] @ wmv                                                # (H, 2)
    b_head = params["b1"] @ wmv + bmv                                          # (1, 2)

    mean, log_var = head_forward(h_last, w_head, b_head)
    reg = rnn_regularizer(params["layers"], p)
    return mean, log_var, reg


def net_reference(input_value, input_time, params, masks, p=0.2):
    emb = jnp.take(params["embedding"], input_value, axis=0)
    combined = jnp.concatenate([emb, input_time[..., None].astype(jnp.float32)], axis=2)
    x = jnp.transpose(combined, (1, 0, 2))
    B = x.shape[1]
    H = params["layers"][0]["uh"].shape[-1]
    h = jnp.zeros((B, H), jnp.float32)
    c = jnp.zeros((B, H), jnp.float32)
    out = x
    for lp, (zx, zh) in zip(params["layers"], masks):
        hs = []
        for t in range(out.shape[0]):
            xt = out[t]
            pre = [(xt * zx[g]) @ lp["wx"][g] + lp["bx"][g]
                   + (h * zh[g]) @ lp["uh"][g] + lp["bh"][g] for g in range(4)]
            i = jax.nn.sigmoid(pre[0]); f = jax.nn.sigmoid(pre[1])
            o = jax.nn.sigmoid(pre[2]); g_ = jnp.tanh(pre[3])
            c = f * c + i * g_
            h = o * jnp.tanh(c)
            hs.append(h)
        out = jnp.stack(hs, axis=0)
    r = h @ params["w1"] + params["b1"]
    mean = r @ params["wm"] + params["bm"]
    log_var = jnp.clip(r @ params["wv"] + params["bv"], -10.0, 10.0)
    return mean, log_var, rnn_regularizer(params["layers"], p)


# ---------------------------------------------------------------------------
# Demo
# ---------------------------------------------------------------------------

if __name__ == "__main__":
    num_features_df = 10        # vocab = 11 (index 0 is padding)
    value_embedding = 7         # -> rnn input size D = 8
    hidden_size = 32
    num_layers = 2
    batch = 8
    seq = 8
    dropout_p = 0.2

    key = jax.random.PRNGKey(0)
    k_params, k_val, k_time, k_mask = jax.random.split(key, 4)

    params = init_params(k_params, num_features_df, value_embedding, hidden_size, num_layers)

    input_value = jax.random.randint(k_val, (batch, seq), 0, num_features_df + 1, jnp.int32)
    input_time = jax.random.uniform(k_time, (batch, seq), jnp.float32)

    D = value_embedding + 1
    mask_keys = jax.random.split(k_mask, num_layers)
    masks = [sample_layer_masks(mask_keys[li], batch,
                                D if li == 0 else hidden_size, hidden_size, dropout_p)
             for li in range(num_layers)]

    mean, log_var, reg = net_forward(input_value, input_time, params, masks, dropout_p)
    mean, log_var, reg = jax.block_until_ready((mean, log_var, reg))

    ref_mean, ref_lv, ref_reg = net_reference(input_value, input_time, params, masks, dropout_p)

    assert mean.shape == (batch, 1) and log_var.shape == (batch, 1)
    assert jnp.allclose(mean, ref_mean, atol=1e-3, rtol=1e-3), "mean mismatch vs JAX reference"
    assert jnp.allclose(log_var, ref_lv, atol=1e-3, rtol=1e-3), "log_var mismatch vs JAX reference"
    assert jnp.allclose(reg, ref_reg, atol=1e-6, rtol=1e-6), "regularizer mismatch"

    print("KERNEL_OK")
</pallas_src>

<mosaic_0001>
module attributes {stable_mosaic.version = 11 : i64} {
  func.func @_lstm_layer_kernel(%arg0: i32, %arg1: memref<8x8x8xf32, #tpu.memory_space<vmem>>, %arg2: memref<4x8x8xf32, #tpu.memory_space<vmem>>, %arg3: memref<4x8x32xf32, #tpu.memory_space<vmem>>, %arg4: memref<4x8x32xf32, #tpu.memory_space<vmem>>, %arg5: memref<4x1x32xf32, #tpu.memory_space<vmem>>, %arg6: memref<4x32x32xf32, #tpu.memory_space<vmem>>, %arg7: memref<4x1x32xf32, #tpu.memory_space<vmem>>, %arg8: memref<8x32xf32, #tpu.memory_space<vmem>>, %arg9: memref<8x32xf32, #tpu.memory_space<vmem>>, %arg10: memref<8x8x32xf32, #tpu.memory_space<vmem>>, %arg11: memref<8x32xf32, #tpu.memory_space<vmem>>, %arg12: memref<8x32xf32, #tpu.memory_space<vmem>>) attributes {dimension_semantics = [#tpu.dimension_semantics<parallel>], iteration_bounds = array<i64: 1>, scalar_prefetch = 0 : i64, scratch_operands = 0 : i64, tpu.core_type = #tpu.core_type<tc>, window_params = [{transform_indices = @transform_0, window_bounds = array<i64: 8, 8, 8>}, {transform_indices = @transform_1, window_bounds = array<i64: 4, 8, 8>}, {transform_indices = @transform_2, window_bounds = array<i64: 4, 8, 32>}, {pipeline_mode = #tpu.pipeline_mode<synchronous>, transform_indices = @transform_3, window_bounds = array<i64: 4, 8, 32>}, {pipeline_mode = #tpu.pipeline_mode<synchronous>, transform_indices = @transform_4, window_bounds = array<i64: 4, 1, 32>}, {pipeline_mode = #tpu.pipeline_mode<synchronous>, transform_indices = @transform_5, window_bounds = array<i64: 4, 32, 32>}, {pipeline_mode = #tpu.pipeline_mode<synchronous>, transform_indices = @transform_6, window_bounds = array<i64: 4, 1, 32>}, {transform_indices = @transform_7, window_bounds = array<i64: 8, 32>}, {transform_indices = @transform_8, window_bounds = array<i64: 8, 32>}, {transform_indices = @transform_9, window_bounds = array<i64: 8, 8, 32>}, {transform_indices = @transform_10, window_bounds = array<i64: 8, 32>}, {transform_indices = @transform_11, window_bounds = array<i64: 8, 32>}]} {
    %c0 = arith.constant 0 : index
    %c0_0 = arith.constant 0 : index
    %0 = vector.load %arg8[%c0, %c0_0] : memref<8x32xf32, #tpu.memory_space<vmem>>, vector<8x32xf32>
    %c0_1 = arith.constant 0 : index
    %c0_2 = arith.constant 0 : index
    %1 = vector.load %arg9[%c0_1, %c0_2] : memref<8x32xf32, #tpu.memory_space<vmem>>, vector<8x32xf32>
    %c0_i32 = arith.constant 0 : i32
    %c8_i32 = arith.constant 8 : i32
    %2 = arith.addi %c0_i32, %c8_i32 : i32
    %c1_i32 = arith.constant 1 : i32
    %3:2 = scf.for %arg13 = %c0_i32 to %2 step %c1_i32 iter_args(%arg14 = %0, %arg15 = %1) -> (vector<8x32xf32>, vector<8x32xf32>)  : i32 {
      %6 = arith.index_cast %arg13 : i32 to index
      %c0_8 = arith.constant 0 : index
      %c0_9 = arith.constant 0 : index
      %7 = vector.load %arg1[%6, %c0_8, %c0_9] : memref<8x8x8xf32, #tpu.memory_space<vmem>>, vector<1x8x8xf32>
      %8 = vector.shape_cast %7 : vector<1x8x8xf32> to vector<8x8xf32>
      %c0_10 = arith.constant 0 : index
      %c0_11 = arith.constant 0 : index
      %c0_12 = arith.constant 0 : index
      %9 = vector.load %arg2[%c0_10, %c0_11, %c0_12] : memref<4x8x8xf32, #tpu.memory_space<vmem>>, vector<1x8x8xf32>
      %10 = vector.shape_cast %9 : vector<1x8x8xf32> to vector<8x8xf32>
      %11 = arith.mulf %8, %10 : vector<8x8xf32>
      %c0_13 = arith.constant 0 : index
      %c0_14 = arith.constant 0 : index
      %c0_15 = arith.constant 0 : index
      %12 = vector.load %arg3[%c0_13, %c0_14, %c0_15] : memref<4x8x32xf32, #tpu.memory_space<vmem>>, vector<1x8x32xf32>
      %13 = vector.shape_cast %12 : vector<1x8x32xf32> to vector<8x32xf32>
      %14 = arith.mulf %arg14, %13 : vector<8x32xf32>
      %c0_16 = arith.constant 0 : index
      %c0_17 = arith.constant 0 : index
      %c0_18 = arith.constant 0 : index
      %15 = vector.load %arg4[%c0_16, %c0_17, %c0_18] : memref<4x8x32xf32, #tpu.memory_space<vmem>>, vector<1x8x32xf32>
      %16 = vector.shape_cast %15 : vector<1x8x32xf32> to vector<8x32xf32>
      %cst = arith.constant dense<0.000000e+00> : vector<8x32xf32>
      %17 = tpu.matmul %11, %16, %cst {dimension_numbers = #tpu.dot_dimension_numbers<[1], [0], [0], [1], [0, 0, 1, 1], [], []>} : vector<8x8xf32>, vector<8x32xf32>, vector<8x32xf32> -> vector<8x32xf32>
      %c0_19 = arith.constant 0 : index
      %c0_20 = arith.constant 0 : index
      %c0_21 = arith.constant 0 : index
      %18 = vector.load %arg5[%c0_19, %c0_20, %c0_21] : memref<4x1x32xf32, #tpu.memory_space<vmem>>, vector<1x1x32xf32>
      %19 = vector.shape_cast %18 : vector<1x1x32xf32> to vector<1x32xf32>
      %20 = vector.broadcast %19 : vector<1x32xf32> to vector<8x32xf32>
      %21 = arith.addf %17, %20 : vector<8x32xf32>
      %c0_22 = arith.constant 0 : index
      %c0_23 = arith.constant 0 : index
      %c0_24 = arith.constant 0 : index
      %22 = vector.load %arg6[%c0_22, %c0_23, %c0_24] : memref<4x32x32xf32, #tpu.memory_space<vmem>>, vector<1x32x32xf32>
      %23 = vector.shape_cast %22 : vector<1x32x32xf32> to vector<32x32xf32>
      %cst_25 = arith.constant dense<0.000000e+00> : vector<8x32xf32>
      %24 = tpu.matmul %14, %23, %cst_25 {dimension_numbers = #tpu.dot_dimension_numbers<[1], [0], [0], [1], [0, 0, 1, 1], [], []>} : vector<8x32xf32>, vector<32x32xf32>, vector<8x32xf32> -> vector<8x32xf32>
      %25 = arith.addf %21, %24 : vector<8x32xf32>
      %c0_26 = arith.constant 0 : index
      %c0_27 = arith.constant 0 : index
      %c0_28 = arith.constant 0 : index
      %26 = vector.load %arg7[%c0_26, %c0_27, %c0_28] : memref<4x1x32xf32, #tpu.memory_space<vmem>>, vector<1x1x32xf32>
      %27 = vector.shape_cast %26 : vector<1x1x32xf32> to vector<1x32xf32>
      %28 = vector.broadcast %27 : vector<1x32xf32> to vector<8x32xf32>
      %29 = arith.addf %25, %28 : vector<8x32xf32>
      %c1 = arith.constant 1 : index
      %c0_29 = arith.constant 0 : index
      %c0_30 = arith.constant 0 : index
      %30 = vector.load %arg2[%c1, %c0_29, %c0_30] : memref<4x8x8xf32, #tpu.memory_space<vmem>>, vector<1x8x8xf32>
      %31 = vector.shape_cast %30 : vector<1x8x8xf32> to vector<8x8xf32>
      %32 = arith.mulf %8, %31 : vector<8x8xf32>
      %c1_31 = arith.constant 1 : index
      %c0_32 = arith.constant 0 : index
      %c0_33 = arith.constant 0 : index
      %33 = vector.load %arg3[%c1_31, %c0_32, %c0_33] : memref<4x8x32xf32, #tpu.memory_space<vmem>>, vector<1x8x32xf32>
      %34 = vector.shape_cast %33 : vector<1x8x32xf32> to vector<8x32xf32>
      %35 = arith.mulf %arg14, %34 : vector<8x32xf32>
      %c1_34 = arith.constant 1 : index
      %c0_35 = arith.constant 0 : index
      %c0_36 = arith.constant 0 : index
      %36 = vector.load %arg4[%c1_34, %c0_35, %c0_36] : memref<4x8x32xf32, #tpu.memory_space<vmem>>, vector<1x8x32xf32>
      %37 = vector.shape_cast %36 : vector<1x8x32xf32> to vector<8x32xf32>
      %cst_37 = arith.constant dense<0.000000e+00> : vector<8x32xf32>
      %38 = tpu.matmul %32, %37, %cst_37 {dimension_numbers = #tpu.dot_dimension_numbers<[1], [0], [0], [1], [0, 0, 1, 1], [], []>} : vector<8x8xf32>, vector<8x32xf32>, vector<8x32xf32> -> vector<8x32xf32>
      %c1_38 = arith.constant 1 : index
      %c0_39 = arith.constant 0 : index
      %c0_40 = arith.constant 0 : index
      %39 = vector.load %arg5[%c1_38, %c0_39, %c0_40] : memref<4x1x32xf32, #tpu.memory_space<vmem>>, vector<1x1x32xf32>
      %40 = vector.shape_cast %39 : vector<1x1x32xf32> to vector<1x32xf32>
      %41 = vector.broadcast %40 : vector<1x32xf32> to vector<8x32xf32>
      %42 = arith.addf %38, %41 : vector<8x32xf32>
      %c1_41 = arith.constant 1 : index
      %c0_42 = arith.constant 0 : index
      %c0_43 = arith.constant 0 : index
      %43 = vector.load %arg6[%c1_41, %c0_42, %c0_43] : memref<4x32x32xf32, #tpu.memory_space<vmem>>, vector<1x32x32xf32>
      %44 = vector.shape_cast %43 : vector<1x32x32xf32> to vector<32x32xf32>
      %cst_44 = arith.constant dense<0.000000e+00> : vector<8x32xf32>
      %45 = tpu.matmul %35, %44, %cst_44 {dimension_numbers = #tpu.dot_dimension_numbers<[1], [0], [0], [1], [0, 0, 1, 1], [], []>} : vector<8x32xf32>, vector<32x32xf32>, vector<8x32xf32> -> vector<8x32xf32>
      %46 = arith.addf %42, %45 : vector<8x32xf32>
      %c1_45 = arith.constant 1 : index
      %c0_46 = arith.constant 0 : index
      %c0_47 = arith.constant 0 : index
      %47 = vector.load %arg7[%c1_45, %c0_46, %c0_47] : memref<4x1x32xf32, #tpu.memory_space<vmem>>, vector<1x1x32xf32>
      %48 = vector.shape_cast %47 : vector<1x1x32xf32> to vector<1x32xf32>
      %49 = vector.broadcast %48 : vector<1x32xf32> to vector<8x32xf32>
      %50 = arith.addf %46, %49 : vector<8x32xf32>
      %c2 = arith.constant 2 : index
      %c0_48 = arith.constant 0 : index
      %c0_49 = arith.constant 0 : index
      %51 = vector.load %arg2[%c2, %c0_48, %c0_49] : memref<4x8x8xf32, #tpu.memory_space<vmem>>, vector<1x8x8xf32>
      %52 = vector.shape_cast %51 : vector<1x8x8xf32> to vector<8x8xf32>
      %53 = arith.mulf %8, %52 : vector<8x8xf32>
      %c2_50 = arith.constant 2 : index
      %c0_51 = arith.constant 0 : index
      %c0_52 = arith.constant 0 : index
      %54 = vector.load %arg3[%c2_50, %c0_51, %c0_52] : memref<4x8x32xf32, #tpu.memory_space<vmem>>, vector<1x8x32xf32>
      %55 = vector.shape_cast %54 : vector<1x8x32xf32> to vector<8x32xf32>
      %56 = arith.mulf %arg14, %55 : vector<8x32xf32>
      %c2_53 = arith.constant 2 : index
      %c0_54 = arith.constant 0 : index
      %c0_55 = arith.constant 0 : index
      %57 = vector.load %arg4[%c2_53, %c0_54, %c0_55] : memref<4x8x32xf32, #tpu.memory_space<vmem>>, vector<1x8x32xf32>
      %58 = vector.shape_cast %57 : vector<1x8x32xf32> to vector<8x32xf32>
      %cst_56 = arith.constant dense<0.000000e+00> : vector<8x32xf32>
      %59 = tpu.matmul %53, %58, %cst_56 {dimension_numbers = #tpu.dot_dimension_numbers<[1], [0], [0], [1], [0, 0, 1, 1], [], []>} : vector<8x8xf32>, vector<8x32xf32>, vector<8x32xf32> -> vector<8x32xf32>
      %c2_57 = arith.constant 2 : index
      %c0_58 = arith.constant 0 : index
      %c0_59 = arith.constant 0 : index
      %60 = vector.load %arg5[%c2_57, %c0_58, %c0_59] : memref<4x1x32xf32, #tpu.memory_space<vmem>>, vector<1x1x32xf32>
      %61 = vector.shape_cast %60 : vector<1x1x32xf32> to vector<1x32xf32>
      %62 = vector.broadcast %61 : vector<1x32xf32> to vector<8x32xf32>
      %63 = arith.addf %59, %62 : vector<8x32xf32>
      %c2_60 = arith.constant 2 : index
      %c0_61 = arith.constant 0 : index
      %c0_62 = arith.constant 0 : index
      %64 = vector.load %arg6[%c2_60, %c0_61, %c0_62] : memref<4x32x32xf32, #tpu.memory_space<vmem>>, vector<1x32x32xf32>
      %65 = vector.shape_cast %64 : vector<1x32x32xf32> to vector<32x32xf32>
      %cst_63 = arith.constant dense<0.000000e+00> : vector<8x32xf32>
      %66 = tpu.matmul %56, %65, %cst_63 {dimension_numbers = #tpu.dot_dimension_numbers<[1], [0], [0], [1], [0, 0, 1, 1], [], []>} : vector<8x32xf32>, vector<32x32xf32>, vector<8x32xf32> -> vector<8x32xf32>
      %67 = arith.addf %63, %66 : vector<8x32xf32>
      %c2_64 = arith.constant 2 : index
      %c0_65 = arith.constant 0 : index
      %c0_66 = arith.constant 0 : index
      %68 = vector.load %arg7[%c2_64, %c0_65, %c0_66] : memref<4x1x32xf32, #tpu.memory_space<vmem>>, vector<1x1x32xf32>
      %69 = vector.shape_cast %68 : vector<1x1x32xf32> to vector<1x32xf32>
      %70 = vector.broadcast %69 : vector<1x32xf32> to vector<8x32xf32>
      %71 = arith.addf %67, %70 : vector<8x32xf32>
      %c3 = arith.constant 3 : index
      %c0_67 = arith.constant 0 : index
      %c0_68 = arith.constant 0 : index
      %72 = vector.load %arg2[%c3, %c0_67, %c0_68] : memref<4x8x8xf32, #tpu.memory_space<vmem>>, vector<1x8x8xf32>
      %73 = vector.shape_cast %72 : vector<1x8x8xf32> to vector<8x8xf32>
      %74 = arith.mulf %8, %73 : vector<8x8xf32>
      %c3_69 = arith.constant 3 : index
      %c0_70 = arith.constant 0 : index
      %c0_71 = arith.constant 0 : index
      %75 = vector.load %arg3[%c3_69, %c0_70, %c0_71] : memref<4x8x32xf32, #tpu.memory_space<vmem>>, vector<1x8x32xf32>
      %76 = vector.shape_cast %75 : vector<1x8x32xf32> to vector<8x32xf32>
      %77 = arith.mulf %arg14, %76 : vector<8x32xf32>
      %c3_72 = arith.constant 3 : index
      %c0_73 = arith.constant 0 : index
      %c0_74 = arith.constant 0 : index
      %78 = vector.load %arg4[%c3_72, %c0_73, %c0_74] : memref<4x8x32xf32, #tpu.memory_space<vmem>>, vector<1x8x32xf32>
      %79 = vector.shape_cast %78 : vector<1x8x32xf32> to vector<8x32xf32>
      %cst_75 = arith.constant dense<0.000000e+00> : vector<8x32xf32>
      %80 = tpu.matmul %74, %79, %cst_75 {dimension_numbers = #tpu.dot_dimension_numbers<[1], [0], [0], [1], [0, 0, 1, 1], [], []>} : vector<8x8xf32>, vector<8x32xf32>, vector<8x32xf32> -> vector<8x32xf32>
      %c3_76 = arith.constant 3 : index
      %c0_77 = arith.constant 0 : index
      %c0_78 = arith.constant 0 : index
      %81 = vector.load %arg5[%c3_76, %c0_77, %c0_78] : memref<4x1x32xf32, #tpu.memory_space<vmem>>, vector<1x1x32xf32>
      %82 = vector.shape_cast %81 : vector<1x1x32xf32> to vector<1x32xf32>
      %83 = vector.broadcast %82 : vector<1x32xf32> to vector<8x32xf32>
      %84 = arith.addf %80, %83 : vector<8x32xf32>
      %c3_79 = arith.constant 3 : index
      %c0_80 = arith.constant 0 : index
      %c0_81 = arith.constant 0 : index
      %85 = vector.load %arg6[%c3_79, %c0_80, %c0_81] : memref<4x32x32xf32, #tpu.memory_space<vmem>>, vector<1x32x32xf32>
      %86 = vector.shape_cast %85 : vector<1x32x32xf32> to vector<32x32xf32>
      %cst_82 = arith.constant dense<0.000000e+00> : vector<8x32xf32>
      %87 = tpu.matmul %77, %86, %cst_82 {dimension_numbers = #tpu.dot_dimension_numbers<[1], [0], [0], [1], [0, 0, 1, 1], [], []>} : vector<8x32xf32>, vector<32x32xf32>, vector<8x32xf32> -> vector<8x32xf32>
      %88 = arith.addf %84, %87 : vector<8x32xf32>
      %c3_83 = arith.constant 3 : index
      %c0_84 = arith.constant 0 : index
      %c0_85 = arith.constant 0 : index
      %89 = vector.load %arg7[%c3_83, %c0_84, %c0_85] : memref<4x1x32xf32, #tpu.memory_space<vmem>>, vector<1x1x32xf32>
      %90 = vector.shape_cast %89 : vector<1x1x32xf32> to vector<1x32xf32>
      %91 = vector.broadcast %90 : vector<1x32xf32> to vector<8x32xf32>
      %92 = arith.addf %88, %91 : vector<8x32xf32>
      %93 = arith.negf %29 : vector<8x32xf32>
      %94 = math.exp %93 : vector<8x32xf32>
      %cst_86 = arith.constant 1.000000e+00 : f32
      %95 = vector.broadcast %cst_86 : f32 to vector<8x32xf32>
      %96 = arith.addf %95, %94 : vector<8x32xf32>
      %97 = arith.divf %95, %96 : vector<8x32xf32>
      %98 = arith.negf %50 : vector<8x32xf32>
      %99 = math.exp %98 : vector<8x32xf32>
      %cst_87 = arith.constant 1.000000e+00 : f32
      %100 = vector.broadcast %cst_87 : f32 to vector<8x32xf32>
      %101 = arith.addf %100, %99 : vector<8x32xf32>
      %102 = arith.divf %100, %101 : vector<8x32xf32>
      %103 = arith.negf %71 : vector<8x32xf32>
      %104 = math.exp %103 : vector<8x32xf32>
      %cst_88 = arith.constant 1.000000e+00 : f32
      %105 = vector.broadcast %cst_88 : f32 to vector<8x32xf32>
      %106 = arith.addf %105, %104 : vector<8x32xf32>
      %107 = arith.divf %105, %106 : vector<8x32xf32>
      %108 = math.tanh %92 : vector<8x32xf32>
      %109 = arith.mulf %102, %arg15 : vector<8x32xf32>
      %110 = arith.mulf %97, %108 : vector<8x32xf32>
      %111 = arith.addf %109, %110 : vector<8x32xf32>
      %112 = math.tanh %111 : vector<8x32xf32>
      %113 = arith.mulf %107, %112 : vector<8x32xf32>
      %114 = arith.index_cast %arg13 : i32 to index
      %c0_89 = arith.constant 0 : index
      %c0_90 = arith.constant 0 : index
      %115 = vector.load %arg10[%114, %c0_89, %c0_90] : memref<8x8x32xf32, #tpu.memory_space<vmem>>, vector<1x8x32xf32>
      %116 = vector.shape_cast %115 : vector<1x8x32xf32> to vector<8x32xf32>
      %117 = vector.shape_cast %113 : vector<8x32xf32> to vector<1x8x32xf32>
      tpu.vector_store %arg10[%114, %c0_89, %c0_90], %117 {strides = array<i32>} : memref<8x8x32xf32, #tpu.memory_space<vmem>>, vector<1x8x32xf32>,
      scf.yield %113, %111 : vector<8x32xf32>, vector<8x32xf32>
    }
    %c8_i32_3 = arith.constant 8 : i32
    %c0_4 = arith.constant 0 : index
    %c0_5 = arith.constant 0 : index
    %4 = vector.load %arg11[%c0_4, %c0_5] : memref<8x32xf32, #tpu.memory_space<vmem>>, vector<8x32xf32>
    tpu.vector_store %arg11[%c0_4, %c0_5], %3#0 {strides = array<i32>} : memref<8x32xf32, #tpu.memory_space<vmem>>, vector<8x32xf32>,
    %c0_6 = arith.constant 0 : index
    %c0_7 = arith.constant 0 : index
    %5 = vector.load %arg12[%c0_6, %c0_7] : memref<8x32xf32, #tpu.memory_space<vmem>>, vector<8x32xf32>
    tpu.vector_store %arg12[%c0_6, %c0_7], %3#1 {strides = array<i32>} : memref<8x32xf32, #tpu.memory_space<vmem>>, vector<8x32xf32>,
    return
  }
  func.func @transform_0(%arg0: i32) -> (i32, i32, i32) {
    %c0_i32 = arith.constant 0 : i32
    %c0_i32_0 = arith.constant 0 : i32
    %c0_i32_1 = arith.constant 0 : i32
    return %c0_i32, %arg0, %c0_i32_0 : i32, i32, i32
  }
  func.func @transform_1(%arg0: i32) -> (i32, i32, i32) {
    %c0_i32 = arith.constant 0 : i32
    %c0_i32_0 = arith.constant 0 : i32
    %c0_i32_1 = arith.constant 0 : i32
    return %c0_i32, %arg0, %c0_i32_0 : i32, i32, i32
  }
  func.func @transform_2(%arg0: i32) -> (i32, i32, i32) {
    %c0_i32 = arith.constant 0 : i32
    %c0_i32_0 = arith.constant 0 : i32
    %c0_i32_1 = arith.constant 0 : i32
    return %c0_i32, %arg0, %c0_i32_0 : i32, i32, i32
  }
  func.func @transform_3(%arg0: i32) -> (i32, i32, i32) {
    %c0_i32 = arith.constant 0 : i32
    %c0_i32_0 = arith.constant 0 : i32
    %c0_i32_1 = arith.constant 0 : i32
    %c0_i32_2 = arith.constant 0 : i32
    return %c0_i32, %c0_i32_0, %c0_i32_1 : i32, i32, i32
  }
  func.func @transform_4(%arg0: i32) -> (i32, i32, i32) {
    %c0_i32 = arith.constant 0 : i32
    %c0_i32_0 = arith.constant 0 : i32
    %c0_i32_1 = arith.constant 0 : i32
    %c0_i32_2 = arith.constant 0 : i32
    return %c0_i32, %c0_i32_0, %c0_i32_1 : i32, i32, i32
  }
  func.func @transform_5(%arg0: i32) -> (i32, i32, i32) {
    %c0_i32 = arith.constant 0 : i32
    %c0_i32_0 = arith.constant 0 : i32
    %c0_i32_1 = arith.constant 0 : i32
    %c0_i32_2 = arith.constant 0 : i32
    return %c0_i32, %c0_i32_0, %c0_i32_1 : i32, i32, i32
  }
  func.func @transform_6(%arg0: i32) -> (i32, i32, i32) {
    %c0_i32 = arith.constant 0 : i32
    %c0_i32_0 = arith.constant 0 : i32
    %c0_i32_1 = arith.constant 0 : i32
    %c0_i32_2 = arith.constant 0 : i32
    return %c0_i32, %c0_i32_0, %c0_i32_1 : i32, i32, i32
  }
  func.func @transform_7(%arg0: i32) -> (i32, i32) {
    %c0_i32 = arith.constant 0 : i32
    %c0_i32_0 = arith.constant 0 : i32
    return %arg0, %c0_i32 : i32, i32
  }
  func.func @transform_8(%arg0: i32) -> (i32, i32) {
    %c0_i32 = arith.constant 0 : i32
    %c0_i32_0 = arith.constant 0 : i32
    return %arg0, %c0_i32 : i32, i32
  }
  func.func @transform_9(%arg0: i32) -> (i32, i32, i32) {
    %c0_i32 = arith.constant 0 : i32
    %c0_i32_0 = arith.constant 0 : i32
    %c0_i32_1 = arith.constant 0 : i32
    return %c0_i32, %arg0, %c0_i32_0 : i32, i32, i32
  }
  func.func @transform_10(%arg0: i32) -> (i32, i32) {
    %c0_i32 = arith.constant 0 : i32
    %c0_i32_0 = arith.constant 0 : i32
    return %arg0, %c0_i32 : i32, i32
  }
  func.func @transform_11(%arg0: i32) -> (i32, i32) {
    %c0_i32 = arith.constant 0 : i32
    %c0_i32_0 = arith.constant 0 : i32
    return %arg0, %c0_i32 : i32, i32
  }
}

</mosaic_0001>

<llo_original>
// kernel: tpu_custom_call.1
$region0: #{tpu_custom_call.1}
  #allocation0 [shape = 'u32[]', space=smem, size = 0x4, offset = 0x4, fixed_abs, tag = 'smem constant byte address 0x4 - core index']
  #allocation1 [shape = 'u32[144,128]{1,0:T(1,128)}', space=vmem, size = 0x12000, scoped, tag = 'internal scratch']
  %s0 = inlined_call_operand.hbm [shape: f32[8,8,8], index: 0, kind: input, shape index: {}]
  %s1 = inlined_call_operand.hbm [shape: f32[4,8,8], index: 1, kind: input, shape index: {}]
  %s2 = inlined_call_operand.hbm [shape: f32[4,8,32], index: 2, kind: input, shape index: {}]
  %s3 = inlined_call_operand.hbm [shape: f32[4,8,32], index: 3, kind: input, shape index: {}]
  %s4 = inlined_call_operand.hbm [shape: f32[4,1,32], index: 4, kind: input, shape index: {}]
  %s5 = inlined_call_operand.hbm [shape: f32[4,32,32], index: 5, kind: input, shape index: {}]
  %s6 = inlined_call_operand.vmem [shape: f32[4,1,32], index: 6, kind: input, shape index: {}]
  %s7 = inlined_call_operand.vmem [shape: f32[8,32], index: 7, kind: input, shape index: {}]
  %s8 = inlined_call_operand.vmem [shape: f32[8,32], index: 8, kind: input, shape index: {}]
  %s9 = inlined_call_operand.hbm [shape: f32[8,8,32], index: 9, kind: output, shape index: {0}]
  %s10 = inlined_call_operand.hbm [shape: f32[8,32], index: 10, kind: output, shape index: {1}]
  %s11 = inlined_call_operand.hbm [shape: f32[8,32], index: 11, kind: output, shape index: {2}]
  %12 = xla_tuple %s9, %s10, %s11
  %s13 = sld [smem:[#allocation0]]
  $region93: #{tpu_custom_call.1} parent=0
    _
  %s15 = ssub.s32 1, %s13
  %s16 = scalar_select 0, %s15, %s13
  $region1: #{tpu_custom_call.1} parent=0
    #allocation2 [shape = 'u8[32768]{0}', space=vmem, size = 0x8000, scoped, tag = 'input window, operand 0, single buffered']
    #allocation3 [shape = 's32[1]{0}', space=sflag, size = 0x4, scoped, tag = 'scoped memory for tpu_custom_call.1']
    #allocation4 [shape = 's32[1]{0}', space=sflag, size = 0x4, scoped, tag = 'scoped memory for tpu_custom_call.1']
    #allocation5 [shape = 'u8[16384]{0}', space=vmem, size = 0x4000, scoped, tag = 'input window, operand 1, single buffered']
    #allocation6 [shape = 's32[1]{0}', space=sflag, size = 0x4, scoped, tag = 'scoped memory for tpu_custom_call.1']
    #allocation7 [shape = 'u8[16384]{0}', space=vmem, size = 0x4000, scoped, tag = 'input window, operand 2, single buffered']
    #allocation8 [shape = 'u8[16384]{0}', space=vmem, size = 0x4000, scoped, tag = 'input window, operand 3, single buffered']
    #allocation9 [shape = 's32[1]{0}', space=sflag, size = 0x4, scoped, tag = 'scoped memory for tpu_custom_call.1']
    #allocation10 [shape = 'u8[2048]{0}', space=vmem, size = 0x800, scoped, tag = 'input window, operand 4, single buffered']
    #allocation11 [shape = 'u8[65536]{0}', space=vmem, size = 0x10000, scoped, tag = 'input window, operand 5, single buffered']
    #allocation12 [shape = 's32[1]{0}', space=sflag, size = 0x4, scoped, tag = 'scoped memory for tpu_custom_call.1']
    #allocation13 [shape = 'u8[32768]{0}', space=vmem, size = 0x8000, scoped, tag = 'output window, operand 0, single buffered']
    #allocation14 [shape = 'u8[4096]{0}', space=vmem, size = 0x1000, scoped, tag = 'output window, operand 1, single buffered']
    #allocation15 [shape = 's32[1]{0}', space=sflag, size = 0x4, scoped, tag = 'scoped memory for tpu_custom_call.1']
    #allocation16 [shape = 'u8[4096]{0}', space=vmem, size = 0x1000, scoped, tag = 'output window, operand 2, single buffered']
    %17 = vsyncpa [#allocation3], 0
    %18 = vsyncpa [#allocation6], 0
    %19 = vsyncpa [#allocation9], 0
    %20 = vsyncpa [#allocation12], 0
    %21 = vsyncpa [#allocation4], 0
    %22 = vsyncpa [#allocation15], 0
    // Predicated region
    $region2: #{tpu_custom_call.1} parent=1 // pred_check
      _
    $region3: #{tpu_custom_call.1} parent=1 // pred_check_branch
      %24 = sbr.rel (0) target = $region5
    $region4: #{tpu_custom_call.1} parent=1 // pred_region
      %s26 = ssub.s32 1024, 1024
      %27 = vsyncadd [#allocation3], %s26
      %s28 = sshll.u32 [#allocation2], 4
      %s29 = int_to_ptr.vmem [resolvable:$true] %s28
      %34 = dma.hbm_to_vmem [thread:$0]  %s0, 1024, %s29, [#allocation3], 128, 128, 8
    $region5: #{tpu_custom_call.1} parent=1 // pred_fallthru
      _
    // Predicated region
    $region6: #{tpu_custom_call.1} parent=1 // pred_check
      _
    $region7: #{tpu_custom_call.1} parent=1 // pred_check_branch
      %36 = sbr.rel (0) target = $region9
    $region8: #{tpu_custom_call.1} parent=1 // pred_region
      %s38 = ssub.s32 512, 512
      %39 = vsyncadd [#allocation6], %s38
      %s40 = sshll.u32 [#allocation5], 4
      %s41 = int_to_ptr.vmem [resolvable:$true] %s40
      %46 = dma.hbm_to_vmem [thread:$0]  %s1, 512, %s41, [#allocation6], 128, 128, 8
    $region9: #{tpu_custom_call.1} parent=1 // pred_fallthru
      _
    // Predicated region
    $region10: #{tpu_custom_call.1} parent=1 // pred_check
      _
    $region11: #{tpu_custom_call.1} parent=1 // pred_check_branch
      %48 = sbr.rel (0) target = $region13
    $region12: #{tpu_custom_call.1} parent=1 // pred_region
      %s50 = ssub.s32 512, 512
      %51 = vsyncadd [#allocation6], %s50
      %s52 = sshll.u32 [#allocation7], 4
      %s53 = int_to_ptr.vmem [resolvable:$true] %s52
      %58 = dma.hbm_to_vmem [thread:$0]  %s2, 512, %s53, [#allocation6], 128, 128, 8
    $region13: #{tpu_custom_call.1} parent=1 // pred_fallthru
      _
    // Predicated region
    $region14: #{tpu_custom_call.1} parent=1 // pred_check
      _
    $region15: #{tpu_custom_call.1} parent=1 // pred_check_branch
      %60 = sbr.rel (0) target = $region17
    $region16: #{tpu_custom_call.1} parent=1 // pred_region
      %s62 = ssub.s32 512, 512
      %63 = vsyncadd [#allocation9], %s62
      %s64 = sshll.u32 [#allocation8], 4
      %s65 = int_to_ptr.vmem [resolvable:$true] %s64
      %70 = dma.hbm_to_vmem [thread:$0]  %s3, 512, %s65, [#allocation9], 128, 128, 8
    $region17: #{tpu_custom_call.1} parent=1 // pred_fallthru
      _
    // Predicated region
    $region18: #{tpu_custom_call.1} parent=1 // pred_check
      _
    $region19: #{tpu_custom_call.1} parent=1 // pred_check_branch
      %72 = sbr.rel (0) target = $region21
    $region20: #{tpu_custom_call.1} parent=1 // pred_region
      %s74 = ssub.s32 64, 64
      %75 = vsyncadd [#allocation9], %s74
      %s76 = sshll.u32 [#allocation10], 4
      %s77 = int_to_ptr.vmem [resolvable:$true] %s76
      %82 = dma.hbm_to_vmem [thread:$0]  %s4, 64, %s77, [#allocation9], 16, 16, 1
    $region21: #{tpu_custom_call.1} parent=1 // pred_fallthru
      _
    // Predicated region
    $region22: #{tpu_custom_call.1} parent=1 // pred_check
      _
    $region23: #{tpu_custom_call.1} parent=1 // pred_check_branch
      %84 = sbr.rel (0) target = $region25
    $region24: #{tpu_custom_call.1} parent=1 // pred_region
      %s86 = ssub.s32 2048, 2048
      %87 = vsyncadd [#allocation12], %s86
      %s88 = sshll.u32 [#allocation11], 4
      %s89 = int_to_ptr.vmem [resolvable:$true] %s88
      %94 = dma.hbm_to_vmem [thread:$0]  %s5, 2048, %s89, [#allocation12], 128, 128, 8
    $region25: #{tpu_custom_call.1} parent=1 // pred_fallthru
      _
    // Predicated region
    $region26: #{tpu_custom_call.1} parent=1 // pred_check
      _
    $region27: #{tpu_custom_call.1} parent=1 // pred_check_branch
      %96 = sbr.rel (0) target = $region29
    $region28: #{tpu_custom_call.1} parent=1 // pred_region
      _
    $region29: #{tpu_custom_call.1} parent=1 // pred_fallthru
      _
    // Predicated region
    $region30: #{tpu_custom_call.1} parent=1 // pred_check
      _
    $region31: #{tpu_custom_call.1} parent=1 // pred_check_branch
      %98 = sbr.rel (0) target = $region33
    $region32: #{tpu_custom_call.1} parent=1 // pred_region
      _
    $region33: #{tpu_custom_call.1} parent=1 // pred_fallthru
      _
    // Predicated region
    $region34: #{tpu_custom_call.1} parent=1 // pred_check
      _
    $region35: #{tpu_custom_call.1} parent=1 // pred_check_branch
      %100 = sbr.rel (0) target = $region37
    $region36: #{tpu_custom_call.1} parent=1 // pred_region
      _
    $region37: #{tpu_custom_call.1} parent=1 // pred_fallthru
      _
    // Predicated region
    $region38: #{tpu_custom_call.1} parent=1 // pred_check
      _
    $region39: #{tpu_custom_call.1} parent=1 // pred_check_branch
      %102 = sbr.rel (0) target = $region41
    $region40: #{tpu_custom_call.1} parent=1 // pred_region
      %103 = dma.done [#allocation3], 1024
    $region41: #{tpu_custom_call.1} parent=1 // pred_fallthru
      _
    // Predicated region
    $region42: #{tpu_custom_call.1} parent=1 // pred_check
      _
    $region43: #{tpu_custom_call.1} parent=1 // pred_check_branch
      %105 = sbr.rel (0) target = $region45
    $region44: #{tpu_custom_call.1} parent=1 // pred_region
      %106 = dma.done [#allocation6], 512
    $region45: #{tpu_custom_call.1} parent=1 // pred_fallthru
      _
    // Predicated region
    $region46: #{tpu_custom_call.1} parent=1 // pred_check
      _
    $region47: #{tpu_custom_call.1} parent=1 // pred_check_branch
      %108 = sbr.rel (0) target = $region49
    $region48: #{tpu_custom_call.1} parent=1 // pred_region
      %109 = dma.done [#allocation6], 512
    $region49: #{tpu_custom_call.1} parent=1 // pred_fallthru
      _
    // Predicated region
    $region50: #{tpu_custom_call.1} parent=1 // pred_check
      _
    $region51: #{tpu_custom_call.1} parent=1 // pred_check_branch
      %111 = sbr.rel (0) target = $region53
    $region52: #{tpu_custom_call.1} parent=1 // pred_region
      %112 = dma.done [#allocation9], 512
    $region53: #{tpu_custom_call.1} parent=1 // pred_fallthru
      _
    // Predicated region
    $region54: #{tpu_custom_call.1} parent=1 // pred_check
      _
    $region55: #{tpu_custom_call.1} parent=1 // pred_check_branch
      %114 = sbr.rel (0) target = $region57
    $region56: #{tpu_custom_call.1} parent=1 // pred_region
      %115 = dma.done [#allocation9], 64
    $region57: #{tpu_custom_call.1} parent=1 // pred_fallthru
      _
    // Predicated region
    $region58: #{tpu_custom_call.1} parent=1 // pred_check
      _
    $region59: #{tpu_custom_call.1} parent=1 // pred_check_branch
      %117 = sbr.rel (0) target = $region61
    $region60: #{tpu_custom_call.1} parent=1 // pred_region
      %118 = dma.done [#allocation12], 2048
    $region61: #{tpu_custom_call.1} parent=1 // pred_fallthru
      _
    %v119 = vld [vmem:[%s7] sm:$0xff]
    %v120 = vld [vmem:[%s8] sm:$0xff]
    loop: start=0, step=1, limit=8
    $region62: #{tpu_custom_call.1} parent=1 // loop_pre_header
      _
    $region63: #{tpu_custom_call.1} parent=1 // loop_header
      %s122 = sphi 0, %s126
      %p123 = scmp.ge.s32.totalorder %s122, 8
      %v127 = vphi %v119, %v859
      %v128 = vphi %v120, %v857
    $region64: #{tpu_custom_call.1} parent=1 // loop_header_branch
      %125 = sbr.rel (%p123) target = $region68
    $region65: #{tpu_custom_call.1} parent=1 // loop_body
      %s129 = smul.u32 %s122, 8
      %s130 = scalar_lea.vmem [#allocation2], %s129
      %v131 = vld [vmem:[%s130] sm:$0xff]
      %v132 = vld [vmem:[#allocation5] sm:$0xff]
      %v133 = vmul.f32 %v131, %v132
      %v134 = vld [vmem:[#allocation7] sm:$0xff]
      %v135 = vmul.f32 %v127, %v134
      %v136 = vld [vmem:[#allocation8] sm:$0xff]
      %v137 = vld [vmem:[#allocation10] sm:$0x1]
      %v139 = vlaneseq
      %v140 = vshrl.u32 %v139, 7
      %v141 = vsub.s32 0, %v140
      %v142 = vrot.slane %v137, %v141
      %vm144 = vcmask 64512
      %v146 = vsel %vm144, %v133, 0
      %148 = vmatprep.subr.mxu0 0.0
      %149 = vmatpush1.msra.mxu0 %v136
      %150 = vmatprep.subr.mxu0 0.0
      %151 = vmatpush1.msra.mxu0 0.0
      %152 = vmatprep.subr.mxu0 0.0
      %153 = vmatpush1.msra.mxu0 0.0
      %154 = vmatprep.subr.mxu0 0.0
      %155 = vmatpush1.msra.mxu0 0.0
      %156 = vmatprep.subr.mxu0 0.0
      %157 = vmatpush1.msra.mxu0 0.0
      %158 = vmatprep.subr.mxu0 0.0
      %159 = vmatpush1.msra.mxu0 0.0
      %160 = vmatprep.subr.mxu0 0.0
      %161 = vmatpush1.msra.mxu0 0.0
      %162 = vmatprep.subr.mxu0 0.0
      %163 = vmatpush1.msra.mxu0 0.0
      %164 = vmatprep.subr.mxu0 0.0
      %165 = vmatpush1.msra.mxu0 0.0
      %166 = vmatprep.subr.mxu0 0.0
      %167 = vmatpush1.msra.mxu0 0.0
      %168 = vmatprep.subr.mxu0 0.0
      %169 = vmatpush1.msra.mxu0 0.0
      %170 = vmatprep.subr.mxu0 0.0
      %171 = vmatpush1.msra.mxu0 0.0
      %172 = vmatprep.subr.mxu0 0.0
      %173 = vmatpush1.msra.mxu0 0.0
      %174 = vmatprep.subr.mxu0 0.0
      %175 = vmatpush1.msra.mxu0 0.0
      %176 = vmatprep.subr.mxu0 0.0
      %177 = vmatpush1.msra.mxu0 0.0
      %178 = vmatprep.subr.mxu0 0.0
      %179 = vmatpush1.msra.mxu0 0.0
      %180 = vmatprep.subr.mxu0 0.0
      %181 = vmatpush1.msra.mxu0 0.0
      %182 = vmatprep.subr.mxu0 0.0
      %183 = vmatpush1.msra.mxu0 0.0
      %184 = vmatprep.subr.mxu0 0.0
      %185 = vmatpush1.msra.mxu0 0.0
      %186 = vmatprep.subr.mxu0 0.0
      %187 = vmatpush1.msra.mxu0 0.0
      %188 = vmatprep.subr.mxu0 0.0
      %189 = vmatpush1.msra.mxu0 0.0
      %190 = vmatprep.subr.mxu0 0.0
      %191 = vmatpush1.msra.mxu0 0.0
      %192 = vmatprep.subr.mxu0 0.0
      %193 = vmatpush1.msra.mxu0 0.0
      %194 = vmatprep.subr.mxu0 0.0
      %195 = vmatpush1.msra.mxu0 0.0
      %196 = vmatprep.subr.mxu0 0.0
      %197 = vmatpush1.msra.mxu0 0.0
      %198 = vmatprep.subr.mxu0 0.0
      %199 = vmatpush1.msra.mxu0 0.0
      %200 = vmatprep.subr.mxu0 0.0
      %201 = vmatpush1.msra.mxu0 0.0
      %202 = vmatprep.subr.mxu0 0.0
      %203 = vmatpush1.msra.mxu0 0.0
      %204 = vmatprep.subr.mxu0 0.0
      %205 = vmatpush1.msra.mxu0 0.0
      %206 = vmatprep.subr.mxu0 0.0
      %207 = vmatpush1.msra.mxu0 0.0
      %208 = vmatprep.subr.mxu0 0.0
      %209 = vmatpush1.msra.mxu0 0.0
      %210 = vmatprep.subr.mxu0 0.0
      %211 = vmatpush1.msra.mxu0 0.0
      %212 = vmatprep.mubr.f32.mxu0 0.0
      %213 = vmatmul.mubr.f32.gmra.mrb[0].mxu0 %v146
      %v214 = vpop.f32.mrb[0].mxu0
      %v215 = vadd.f32 %v142, %v214
      %v216 = vpop.f32.mrb[0].mxu0
      %217 = vdwg.mxu0
      %v218 = vld [vmem:[#allocation11] sm:$0xff]
      %v219 = vld [vmem:[#allocation11 + $0x8] sm:$0xff]
      %v220 = vld [vmem:[#allocation11 + $0x10] sm:$0xff]
      %v221 = vld [vmem:[#allocation11 + $0x18] sm:$0xff]
      %vm222 = vcmask 261120
      %v224 = vsel %vm222, %v135, 0
      %226 = vmatprep.subr.mxu0 0.0
      %227 = vmatpush1.msra.mxu0 %v218
      %228 = vmatprep.subr.mxu0 0.0
      %229 = vmatpush1.msra.mxu0 %v219
      %230 = vmatprep.subr.mxu0 0.0
      %231 = vmatpush1.msra.mxu0 %v220
      %232 = vmatprep.subr.mxu0 0.0
      %233 = vmatpush1.msra.mxu0 %v221
      %234 = vmatprep.subr.mxu0 0.0
      %235 = vmatpush1.msra.mxu0 0.0
      %236 = vmatprep.subr.mxu0 0.0
      %237 = vmatpush1.msra.mxu0 0.0
      %238 = vmatprep.subr.mxu0 0.0
      %239 = vmatpush1.msra.mxu0 0.0
      %240 = vmatprep.subr.mxu0 0.0
      %241 = vmatpush1.msra.mxu0 0.0
      %242 = vmatprep.subr.mxu0 0.0
      %243 = vmatpush1.msra.mxu0 0.0
      %244 = vmatprep.subr.mxu0 0.0
      %245 = vmatpush1.msra.mxu0 0.0
      %246 = vmatprep.subr.mxu0 0.0
      %247 = vmatpush1.msra.mxu0 0.0
      %248 = vmatprep.subr.mxu0 0.0
      %249 = vmatpush1.msra.mxu0 0.0
      %250 = vmatprep.subr.mxu0 0.0
      %251 = vmatpush1.msra.mxu0 0.0
      %252 = vmatprep.subr.mxu0 0.0
      %253 = vmatpush1.msra.mxu0 0.0
      %254 = vmatprep.subr.mxu0 0.0
      %255 = vmatpush1.msra.mxu0 0.0
      %256 = vmatprep.subr.mxu0 0.0
      %257 = vmatpush1.msra.mxu0 0.0
      %258 = vmatprep.subr.mxu0 0.0
      %259 = vmatpush1.msra.mxu0 0.0
      %260 = vmatprep.subr.mxu0 0.0
      %261 = vmatpush1.msra.mxu0 0.0
      %262 = vmatprep.subr.mxu0 0.0
      %263 = vmatpush1.msra.mxu0 0.0
      %264 = vmatprep.subr.mxu0 0.0
      %265 = vmatpush1.msra.mxu0 0.0
      %266 = vmatprep.subr.mxu0 0.0
      %267 = vmatpush1.msra.mxu0 0.0
      %268 = vmatprep.subr.mxu0 0.0
      %269 = vmatpush1.msra.mxu0 0.0
      %270 = vmatprep.subr.mxu0 0.0
      %271 = vmatpush1.msra.mxu0 0.0
      %272 = vmatprep.subr.mxu0 0.0
      %273 = vmatpush1.msra.mxu0 0.0
      %274 = vmatprep.subr.mxu0 0.0
      %275 = vmatpush1.msra.mxu0 0.0
      %276 = vmatprep.subr.mxu0 0.0
      %277 = vmatpush1.msra.mxu0 0.0
      %278 = vmatprep.subr.mxu0 0.0
      %279 = vmatpush1.msra.mxu0 0.0
      %280 = vmatprep.subr.mxu0 0.0
      %281 = vmatpush1.msra.mxu0 0.0
      %282 = vmatprep.subr.mxu0 0.0
      %283 = vmatpush1.msra.mxu0 0.0
      %284 = vmatprep.subr.mxu0 0.0
      %285 = vmatpush1.msra.mxu0 0.0
      %286 = vmatprep.subr.mxu0 0.0
      %287 = vmatpush1.msra.mxu0 0.0
      %288 = vmatprep.subr.mxu0 0.0
      %289 = vmatpush1.msra.mxu0 0.0
      %290 = vmatprep.mubr.f32.mxu0 0.0
      %291 = vmatmul.mubr.f32.gmra.mrb[0].mxu0 %v224
      %v292 = vpop.f32.mrb[0].mxu0
      %v293 = vadd.f32 0.0, %v292
      %v294 = vpop.f32.mrb[0].mxu0
      %295 = vdwg.mxu0
      %v296 = vadd.f32 %v215, %v293
      %v297 = vld [vmem:[%s6] sm:$0x1]
      %v299 = vlaneseq
      %v300 = vshrl.u32 %v299, 7
      %v301 = vsub.s32 0, %v300
      %v302 = vrot.slane %v297, %v301
      %v304 = vadd.f32 %v296, %v302
      %s305 = scalar_lea.vmem [#allocation5], 8
      %v306 = vld [vmem:[%s305] sm:$0xff]
      %v307 = vmul.f32 %v131, %v306
      %s308 = scalar_lea.vmem [#allocation7], 8
      %v309 = vld [vmem:[%s308] sm:$0xff]
      %v310 = vmul.f32 %v127, %v309
      %s311 = scalar_lea.vmem [#allocation8], 8
      %v312 = vld [vmem:[%s311] sm:$0xff]
      %s313 = scalar_lea.vmem [#allocation10], 1
      %v314 = vld [vmem:[%s313] sm:$0x1]
      %v316 = vlaneseq
      %v317 = vshrl.u32 %v316, 7
      %v318 = vsub.s32 0, %v317
      %v319 = vrot.slane %v314, %v318
      %v322 = vsel %vm144, %v307, 0
      %324 = vmatprep.subr.mxu0 0.0
      %325 = vmatpush1.msra.mxu0 %v312
      %326 = vmatprep.subr.mxu0 0.0
      %327 = vmatpush1.msra.mxu0 0.0
      %328 = vmatprep.subr.mxu0 0.0
      %329 = vmatpush1.msra.mxu0 0.0
      %330 = vmatprep.subr.mxu0 0.0
      %331 = vmatpush1.msra.mxu0 0.0
      %332 = vmatprep.subr.mxu0 0.0
      %333 = vmatpush1.msra.mxu0 0.0
      %334 = vmatprep.subr.mxu0 0.0
      %335 = vmatpush1.msra.mxu0 0.0
      %336 = vmatprep.subr.mxu0 0.0
      %337 = vmatpush1.msra.mxu0 0.0
      %338 = vmatprep.subr.mxu0 0.0
      %339 = vmatpush1.msra.mxu0 0.0
      %340 = vmatprep.subr.mxu0 0.0
      %341 = vmatpush1.msra.mxu0 0.0
      %342 = vmatprep.subr.mxu0 0.0
      %343 = vmatpush1.msra.mxu0 0.0
      %344 = vmatprep.subr.mxu0 0.0
      %345 = vmatpush1.msra.mxu0 0.0
      %346 = vmatprep.subr.mxu0 0.0
      %347 = vmatpush1.msra.mxu0 0.0
      %348 = vmatprep.subr.mxu0 0.0
      %349 = vmatpush1.msra.mxu0 0.0
      %350 = vmatprep.subr.mxu0 0.0
      %351 = vmatpush1.msra.mxu0 0.0
      %352 = vmatprep.subr.mxu0 0.0
      %353 = vmatpush1.msra.mxu0 0.0
      %354 = vmatprep.subr.mxu0 0.0
      %355 = vmatpush1.msra.mxu0 0.0
      %356 = vmatprep.subr.mxu0 0.0
      %357 = vmatpush1.msra.mxu0 0.0
      %358 = vmatprep.subr.mxu0 0.0
      %359 = vmatpush1.msra.mxu0 0.0
      %360 = vmatprep.subr.mxu0 0.0
      %361 = vmatpush1.msra.mxu0 0.0
      %362 = vmatprep.subr.mxu0 0.0
      %363 = vmatpush1.msra.mxu0 0.0
      %364 = vmatprep.subr.mxu0 0.0
      %365 = vmatpush1.msra.mxu0 0.0
      %366 = vmatprep.subr.mxu0 0.0
      %367 = vmatpush1.msra.mxu0 0.0
      %368 = vmatprep.subr.mxu0 0.0
      %369 = vmatpush1.msra.mxu0 0.0
      %370 = vmatprep.subr.mxu0 0.0
      %371 = vmatpush1.msra.mxu0 0.0
      %372 = vmatprep.subr.mxu0 0.0
      %373 = vmatpush1.msra.mxu0 0.0
      %374 = vmatprep.subr.mxu0 0.0
      %375 = vmatpush1.msra.mxu0 0.0
      %376 = vmatprep.subr.mxu0 0.0
      %377 = vmatpush1.msra.mxu0 0.0
      %378 = vmatprep.subr.mxu0 0.0
      %379 = vmatpush1.msra.mxu0 0.0
      %380 = vmatprep.subr.mxu0 0.0
      %381 = vmatpush1.msra.mxu0 0.0
      %382 = vmatprep.subr.mxu0 0.0
      %383 = vmatpush1.msra.mxu0 0.0
      %384 = vmatprep.subr.mxu0 0.0
      %385 = vmatpush1.msra.mxu0 0.0
      %386 = vmatprep.subr.mxu0 0.0
      %387 = vmatpush1.msra.mxu0 0.0
      %388 = vmatprep.mubr.f32.mxu0 0.0
      %389 = vmatmul.mubr.f32.gmra.mrb[0].mxu0 %v322
      %v390 = vpop.f32.mrb[0].mxu0
      %v391 = vadd.f32 %v319, %v390
      %v392 = vpop.f32.mrb[0].mxu0
      %393 = vdwg.mxu0
      %s394 = scalar_lea.vmem [#allocation11], 32
      %v395 = vld [vmem:[%s394] sm:$0xff]
      %v396 = vld [vmem:[%s394 + $0x8] sm:$0xff]
      %v397 = vld [vmem:[%s394 + $0x10] sm:$0xff]
      %v398 = vld [vmem:[%s394 + $0x18] sm:$0xff]
      %v400 = vsel %vm222, %v310, 0
      %402 = vmatprep.subr.mxu0 0.0
      %403 = vmatpush1.msra.mxu0 %v395
      %404 = vmatprep.subr.mxu0 0.0
      %405 = vmatpush1.msra.mxu0 %v396
      %406 = vmatprep.subr.mxu0 0.0
      %407 = vmatpush1.msra.mxu0 %v397
      %408 = vmatprep.subr.mxu0 0.0
      %409 = vmatpush1.msra.mxu0 %v398
      %410 = vmatprep.subr.mxu0 0.0
      %411 = vmatpush1.msra.mxu0 0.0
      %412 = vmatprep.subr.mxu0 0.0
      %413 = vmatpush1.msra.mxu0 0.0
      %414 = vmatprep.subr.mxu0 0.0
      %415 = vmatpush1.msra.mxu0 0.0
      %416 = vmatprep.subr.mxu0 0.0
      %417 = vmatpush1.msra.mxu0 0.0
      %418 = vmatprep.subr.mxu0 0.0
      %419 = vmatpush1.msra.mxu0 0.0
      %420 = vmatprep.subr.mxu0 0.0
      %421 = vmatpush1.msra.mxu0 0.0
      %422 = vmatprep.subr.mxu0 0.0
      %423 = vmatpush1.msra.mxu0 0.0
      %424 = vmatprep.subr.mxu0 0.0
      %425 = vmatpush1.msra.mxu0 0.0
      %426 = vmatprep.subr.mxu0 0.0
      %427 = vmatpush1.msra.mxu0 0.0
      %428 = vmatprep.subr.mxu0 0.0
      %429 = vmatpush1.msra.mxu0 0.0
      %430 = vmatprep.subr.mxu0 0.0
      %431 = vmatpush1.msra.mxu0 0.0
      %432 = vmatprep.subr.mxu0 0.0
      %433 = vmatpush1.msra.mxu0 0.0
      %434 = vmatprep.subr.mxu0 0.0
      %435 = vmatpush1.msra.mxu0 0.0
      %436 = vmatprep.subr.mxu0 0.0
      %437 = vmatpush1.msra.mxu0 0.0
      %438 = vmatprep.subr.mxu0 0.0
      %439 = vmatpush1.msra.mxu0 0.0
      %440 = vmatprep.subr.mxu0 0.0
      %441 = vmatpush1.msra.mxu0 0.0
      %442 = vmatprep.subr.mxu0 0.0
      %443 = vmatpush1.msra.mxu0 0.0
      %444 = vmatprep.subr.mxu0 0.0
      %445 = vmatpush1.msra.mxu0 0.0
      %446 = vmatprep.subr.mxu0 0.0
      %447 = vmatpush1.msra.mxu0 0.0
      %448 = vmatprep.subr.mxu0 0.0
      %449 = vmatpush1.msra.mxu0 0.0
      %450 = vmatprep.subr.mxu0 0.0
      %451 = vmatpush1.msra.mxu0 0.0
      %452 = vmatprep.subr.mxu0 0.0
      %453 = vmatpush1.msra.mxu0 0.0
      %454 = vmatprep.subr.mxu0 0.0
      %455 = vmatpush1.msra.mxu0 0.0
      %456 = vmatprep.subr.mxu0 0.0
      %457 = vmatpush1.msra.mxu0 0.0
      %458 = vmatprep.subr.mxu0 0.0
      %459 = vmatpush1.msra.mxu0 0.0
      %460 = vmatprep.subr.mxu0 0.0
      %461 = vmatpush1.msra.mxu0 0.0
      %462 = vmatprep.subr.mxu0 0.0
      %463 = vmatpush1.msra.mxu0 0.0
      %464 = vmatprep.subr.mxu0 0.0
      %465 = vmatpush1.msra.mxu0 0.0
      %466 = vmatprep.mubr.f32.mxu0 0.0
      %467 = vmatmul.mubr.f32.gmra.mrb[0].mxu0 %v400
      %v468 = vpop.f32.mrb[0].mxu0
      %v469 = vadd.f32 0.0, %v468
      %v470 = vpop.f32.mrb[0].mxu0
      %471 = vdwg.mxu0
      %v472 = vadd.f32 %v391, %v469
      %s473 = scalar_lea.vmem %s6, 1
      %v474 = vld [vmem:[%s473] sm:$0x1]
      %v476 = vlaneseq
      %v477 = vshrl.u32 %v476, 7
      %v478 = vsub.s32 0, %v477
      %v479 = vrot.slane %v474, %v478
      %v481 = vadd.f32 %v472, %v479
      %s482 = scalar_lea.vmem [#allocation5], 16
      %v483 = vld [vmem:[%s482] sm:$0xff]
      %v484 = vmul.f32 %v131, %v483
      %s485 = scalar_lea.vmem [#allocation7], 16
      %v486 = vld [vmem:[%s485] sm:$0xff]
      %v487 = vmul.f32 %v127, %v486
      %s488 = scalar_lea.vmem [#allocation8], 16
      %v489 = vld [vmem:[%s488] sm:$0xff]
      %s490 = scalar_lea.vmem [#allocation10], 2
      %v491 = vld [vmem:[%s490] sm:$0x1]
      %v493 = vlaneseq
      %v494 = vshrl.u32 %v493, 7
      %v495 = vsub.s32 0, %v494
      %v496 = vrot.slane %v491, %v495
      %v499 = vsel %vm144, %v484, 0
      %501 = vmatprep.subr.mxu0 0.0
      %502 = vmatpush1.msra.mxu0 %v489
      %503 = vmatprep.subr.mxu0 0.0
      %504 = vmatpush1.msra.mxu0 0.0
      %505 = vmatprep.subr.mxu0 0.0
      %506 = vmatpush1.msra.mxu0 0.0
      %507 = vmatprep.subr.mxu0 0.0
      %508 = vmatpush1.msra.mxu0 0.0
      %509 = vmatprep.subr.mxu0 0.0
      %510 = vmatpush1.msra.mxu0 0.0
      %511 = vmatprep.subr.mxu0 0.0
      %512 = vmatpush1.msra.mxu0 0.0
      %513 = vmatprep.subr.mxu0 0.0
      %514 = vmatpush1.msra.mxu0 0.0
      %515 = vmatprep.subr.mxu0 0.0
      %516 = vmatpush1.msra.mxu0 0.0
      %517 = vmatprep.subr.mxu0 0.0
      %518 = vmatpush1.msra.mxu0 0.0
      %519 = vmatprep.subr.mxu0 0.0
      %520 = vmatpush1.msra.mxu0 0.0
      %521 = vmatprep.subr.mxu0 0.0
      %522 = vmatpush1.msra.mxu0 0.0
      %523 = vmatprep.subr.mxu0 0.0
      %524 = vmatpush1.msra.mxu0 0.0
      %525 = vmatprep.subr.mxu0 0.0
      %526 = vmatpush1.msra.mxu0 0.0
      %527 = vmatprep.subr.mxu0 0.0
      %528 = vmatpush1.msra.mxu0 0.0
      %529 = vmatprep.subr.mxu0 0.0
      %530 = vmatpush1.msra.mxu0 0.0
      %531 = vmatprep.subr.mxu0 0.0
      %532 = vmatpush1.msra.mxu0 0.0
      %533 = vmatprep.subr.mxu0 0.0
      %534 = vmatpush1.msra.mxu0 0.0
      %535 = vmatprep.subr.mxu0 0.0
      %536 = vmatpush1.msra.mxu0 0.0
      %537 = vmatprep.subr.mxu0 0.0
      %538 = vmatpush1.msra.mxu0 0.0
      %539 = vmatprep.subr.mxu0 0.0
      %540 = vmatpush1.msra.mxu0 0.0
      %541 = vmatprep.subr.mxu0 0.0
      %542 = vmatpush1.msra.mxu0 0.0
      %543 = vmatprep.subr.mxu0 0.0
      %544 = vmatpush1.msra.mxu0 0.0
      %545 = vmatprep.subr.mxu0 0.0
      %546 = vmatpush1.msra.mxu0 0.0
      %547 = vmatprep.subr.mxu0 0.0
      %548 = vmatpush1.msra.mxu0 0.0
      %549 = vmatprep.subr.mxu0 0.0
      %550 = vmatpush1.msra.mxu0 0.0
      %551 = vmatprep.subr.mxu0 0.0
      %552 = vmatpush1.msra.mxu0 0.0
      %553 = vmatprep.subr.mxu0 0.0
      %554 = vmatpush1.msra.mxu0 0.0
      %555 = vmatprep.subr.mxu0 0.0
      %556 = vmatpush1.msra.mxu0 0.0
      %557 = vmatprep.subr.mxu0 0.0
      %558 = vmatpush1.msra.mxu0 0.0
      %559 = vmatprep.subr.mxu0 0.0
      %560 = vmatpush1.msra.mxu0 0.0
      %561 = vmatprep.subr.mxu0 0.0
      %562 = vmatpush1.msra.mxu0 0.0
      %563 = vmatprep.subr.mxu0 0.0
      %564 = vmatpush1.msra.mxu0 0.0
      %565 = vmatprep.mubr.f32.mxu0 0.0
      %566 = vmatmul.mubr.f32.gmra.mrb[0].mxu0 %v499
      %v567 = vpop.f32.mrb[0].mxu0
      %v568 = vadd.f32 %v496, %v567
      %v569 = vpop.f32.mrb[0].mxu0
      %570 = vdwg.mxu0
      %s571 = scalar_lea.vmem [#allocation11], 64
      %v572 = vld [vmem:[%s571] sm:$0xff]
      %v573 = vld [vmem:[%s571 + $0x8] sm:$0xff]
      %v574 = vld [vmem:[%s571 + $0x10] sm:$0xff]
      %v575 = vld [vmem:[%s571 + $0x18] sm:$0xff]
      %v577 = vsel %vm222, %v487, 0
      %579 = vmatprep.subr.mxu0 0.0
      %580 = vmatpush1.msra.mxu0 %v572
      %581 = vmatprep.subr.mxu0 0.0
      %582 = vmatpush1.msra.mxu0 %v573
      %583 = vmatprep.subr.mxu0 0.0
      %584 = vmatpush1.msra.mxu0 %v574
      %585 = vmatprep.subr.mxu0 0.0
      %586 = vmatpush1.msra.mxu0 %v575
      %587 = vmatprep.subr.mxu0 0.0
      %588 = vmatpush1.msra.mxu0 0.0
      %589 = vmatprep.subr.mxu0 0.0
      %590 = vmatpush1.msra.mxu0 0.0
      %591 = vmatprep.subr.mxu0 0.0
      %592 = vmatpush1.msra.mxu0 0.0
      %593 = vmatprep.subr.mxu0 0.0
      %594 = vmatpush1.msra.mxu0 0.0
      %595 = vmatprep.subr.mxu0 0.0
      %596 = vmatpush1.msra.mxu0 0.0
      %597 = vmatprep.subr.mxu0 0.0
      %598 = vmatpush1.msra.mxu0 0.0
      %599 = vmatprep.subr.mxu0 0.0
      %600 = vmatpush1.msra.mxu0 0.0
      %601 = vmatprep.subr.mxu0 0.0
      %602 = vmatpush1.msra.mxu0 0.0
      %603 = vmatprep.subr.mxu0 0.0
      %604 = vmatpush1.msra.mxu0 0.0
      %605 = vmatprep.subr.mxu0 0.0
      %606 = vmatpush1.msra.mxu0 0.0
      %607 = vmatprep.subr.mxu0 0.0
      %608 = vmatpush1.msra.mxu0 0.0
      %609 = vmatprep.subr.mxu0 0.0
      %610 = vmatpush1.msra.mxu0 0.0
      %611 = vmatprep.subr.mxu0 0.0
      %612 = vmatpush1.msra.mxu0 0.0
      %613 = vmatprep.subr.mxu0 0.0
      %614 = vmatpush1.msra.mxu0 0.0
      %615 = vmatprep.subr.mxu0 0.0
      %616 = vmatpush1.msra.mxu0 0.0
      %617 = vmatprep.subr.mxu0 0.0
      %618 = vmatpush1.msra.mxu0 0.0
      %619 = vmatprep.subr.mxu0 0.0
      %620 = vmatpush1.msra.mxu0 0.0
      %621 = vmatprep.subr.mxu0 0.0
      %622 = vmatpush1.msra.mxu0 0.0
      %623 = vmatprep.subr.mxu0 0.0
      %624 = vmatpush1.msra.mxu0 0.0
      %625 = vmatprep.subr.mxu0 0.0
      %626 = vmatpush1.msra.mxu0 0.0
      %627 = vmatprep.subr.mxu0 0.0
      %628 = vmatpush1.msra.mxu0 0.0
      %629 = vmatprep.subr.mxu0 0.0
      %630 = vmatpush1.msra.mxu0 0.0
      %631 = vmatprep.subr.mxu0 0.0
      %632 = vmatpush1.msra.mxu0 0.0
      %633 = vmatprep.subr.mxu0 0.0
      %634 = vmatpush1.msra.mxu0 0.0
      %635 = vmatprep.subr.mxu0 0.0
      %636 = vmatpush1.msra.mxu0 0.0
      %637 = vmatprep.subr.mxu0 0.0
      %638 = vmatpush1.msra.mxu0 0.0
      %639 = vmatprep.subr.mxu0 0.0
      %640 = vmatpush1.msra.mxu0 0.0
      %641 = vmatprep.subr.mxu0 0.0
      %642 = vmatpush1.msra.mxu0 0.0
      %643 = vmatprep.mubr.f32.mxu0 0.0
      %644 = vmatmul.mubr.f32.gmra.mrb[0].mxu0 %v577
      %v645 = vpop.f32.mrb[0].mxu0
      %v646 = vadd.f32 0.0, %v645
      %v647 = vpop.f32.mrb[0].mxu0
      %648 = vdwg.mxu0
      %v649 = vadd.f32 %v568, %v646
      %s650 = scalar_lea.vmem %s6, 2
      %v651 = vld [vmem:[%s650] sm:$0x1]
      %v653 = vlaneseq
      %v654 = vshrl.u32 %v653, 7
      %v655 = vsub.s32 0, %v654
      %v656 = vrot.slane %v651, %v655
      %v658 = vadd.f32 %v649, %v656
      %s659 = scalar_lea.vmem [#allocation5], 24
      %v660 = vld [vmem:[%s659] sm:$0xff]
      %v661 = vmul.f32 %v131, %v660
      %s662 = scalar_lea.vmem [#allocation7], 24
      %v663 = vld [vmem:[%s662] sm:$0xff]
      %v664 = vmul.f32 %v127, %v663
      %s665 = scalar_lea.vmem [#allocation8], 24
      %v666 = vld [vmem:[%s665] sm:$0xff]
      %s667 = scalar_lea.vmem [#allocation10], 3
      %v668 = vld [vmem:[%s667] sm:$0x1]
      %v670 = vlaneseq
      %v671 = vshrl.u32 %v670, 7
      %v672 = vsub.s32 0, %v671
      %v673 = vrot.slane %v668, %v672
      %v676 = vsel %vm144, %v661, 0
      %678 = vmatprep.subr.mxu0 0.0
      %679 = vmatpush1.msra.mxu0 %v666
      %680 = vmatprep.subr.mxu0 0.0
      %681 = vmatpush1.msra.mxu0 0.0
      %682 = vmatprep.subr.mxu0 0.0
      %683 = vmatpush1.msra.mxu0 0.0
      %684 = vmatprep.subr.mxu0 0.0
      %685 = vmatpush1.msra.mxu0 0.0
      %686 = vmatprep.subr.mxu0 0.0
      %687 = vmatpush1.msra.mxu0 0.0
      %688 = vmatprep.subr.mxu0 0.0
      %689 = vmatpush1.msra.mxu0 0.0
      %690 = vmatprep.subr.mxu0 0.0
      %691 = vmatpush1.msra.mxu0 0.0
      %692 = vmatprep.subr.mxu0 0.0
      %693 = vmatpush1.msra.mxu0 0.0
      %694 = vmatprep.subr.mxu0 0.0
      %695 = vmatpush1.msra.mxu0 0.0
      %696 = vmatprep.subr.mxu0 0.0
      %697 = vmatpush1.msra.mxu0 0.0
      %698 = vmatprep.subr.mxu0 0.0
      %699 = vmatpush1.msra.mxu0 0.0
      %700 = vmatprep.subr.mxu0 0.0
      %701 = vmatpush1.msra.mxu0 0.0
      %702 = vmatprep.subr.mxu0 0.0
      %703 = vmatpush1.msra.mxu0 0.0
      %704 = vmatprep.subr.mxu0 0.0
      %705 = vmatpush1.msra.mxu0 0.0
      %706 = vmatprep.subr.mxu0 0.0
      %707 = vmatpush1.msra.mxu0 0.0
      %708 = vmatprep.subr.mxu0 0.0
      %709 = vmatpush1.msra.mxu0 0.0
      %710 = vmatprep.subr.mxu0 0.0
      %711 = vmatpush1.msra.mxu0 0.0
      %712 = vmatprep.subr.mxu0 0.0
      %713 = vmatpush1.msra.mxu0 0.0
      %714 = vmatprep.subr.mxu0 0.0
      %715 = vmatpush1.msra.mxu0 0.0
      %716 = vmatprep.subr.mxu0 0.0
      %717 = vmatpush1.msra.mxu0 0.0
      %718 = vmatprep.subr.mxu0 0.0
      %719 = vmatpush1.msra.mxu0 0.0
      %720 = vmatprep.subr.mxu0 0.0
      %721 = vmatpush1.msra.mxu0 0.0
      %722 = vmatprep.subr.mxu0 0.0
      %723 = vmatpush1.msra.mxu0 0.0
      %724 = vmatprep.subr.mxu0 0.0
      %725 = vmatpush1.msra.mxu0 0.0
      %726 = vmatprep.subr.mxu0 0.0
      %727 = vmatpush1.msra.mxu0 0.0
      %728 = vmatprep.subr.mxu0 0.0
      %729 = vmatpush1.msra.mxu0 0.0
      %730 = vmatprep.subr.mxu0 0.0
      %731 = vmatpush1.msra.mxu0 0.0
      %732 = vmatprep.subr.mxu0 0.0
      %733 = vmatpush1.msra.mxu0 0.0
      %734 = vmatprep.subr.mxu0 0.0
      %735 = vmatpush1.msra.mxu0 0.0
      %736 = vmatprep.subr.mxu0 0.0
      %737 = vmatpush1.msra.mxu0 0.0
      %738 = vmatprep.subr.mxu0 0.0
      %739 = vmatpush1.msra.mxu0 0.0
      %740 = vmatprep.subr.mxu0 0.0
      %741 = vmatpush1.msra.mxu0 0.0
      %742 = vmatprep.mubr.f32.mxu0 0.0
      %743 = vmatmul.mubr.f32.gmra.mrb[0].mxu0 %v676
      %v744 = vpop.f32.mrb[0].mxu0
      %v745 = vadd.f32 %v673, %v744
      %v746 = vpop.f32.mrb[0].mxu0
      %747 = vdwg.mxu0
      %s748 = scalar_lea.vmem [#allocation11], 96
      %v749 = vld [vmem:[%s748] sm:$0xff]
      %v750 = vld [vmem:[%s748 + $0x8] sm:$0xff]
      %v751 = vld [vmem:[%s748 + $0x10] sm:$0xff]
      %v752 = vld [vmem:[%s748 + $0x18] sm:$0xff]
      %v754 = vsel %vm222, %v664, 0
      %756 = vmatprep.subr.mxu0 0.0
      %757 = vmatpush1.msra.mxu0 %v749
      %758 = vmatprep.subr.mxu0 0.0
      %759 = vmatpush1.msra.mxu0 %v750
      %760 = vmatprep.subr.mxu0 0.0
      %761 = vmatpush1.msra.mxu0 %v751
      %762 = vmatprep.subr.mxu0 0.0
      %763 = vmatpush1.msra.mxu0 %v752
      %764 = vmatprep.subr.mxu0 0.0
      %765 = vmatpush1.msra.mxu0 0.0
      %766 = vmatprep.subr.mxu0 0.0
      %767 = vmatpush1.msra.mxu0 0.0
      %768 = vmatprep.subr.mxu0 0.0
      %769 = vmatpush1.msra.mxu0 0.0
      %770 = vmatprep.subr.mxu0 0.0
      %771 = vmatpush1.msra.mxu0 0.0
      %772 = vmatprep.subr.mxu0 0.0
      %773 = vmatpush1.msra.mxu0 0.0
      %774 = vmatprep.subr.mxu0 0.0
      %775 = vmatpush1.msra.mxu0 0.0
      %776 = vmatprep.subr.mxu0 0.0
      %777 = vmatpush1.msra.mxu0 0.0
      %778 = vmatprep.subr.mxu0 0.0
      %779 = vmatpush1.msra.mxu0 0.0
      %780 = vmatprep.subr.mxu0 0.0
      %781 = vmatpush1.msra.mxu0 0.0
      %782 = vmatprep.subr.mxu0 0.0
      %783 = vmatpush1.msra.mxu0 0.0
      %784 = vmatprep.subr.mxu0 0.0
      %785 = vmatpush1.msra.mxu0 0.0
      %786 = vmatprep.subr.mxu0 0.0
      %787 = vmatpush1.msra.mxu0 0.0
      %788 = vmatprep.subr.mxu0 0.0
      %789 = vmatpush1.msra.mxu0 0.0
      %790 = vmatprep.subr.mxu0 0.0
      %791 = vmatpush1.msra.mxu0 0.0
      %792 = vmatprep.subr.mxu0 0.0
      %793 = vmatpush1.msra.mxu0 0.0
      %794 = vmatprep.subr.mxu0 0.0
      %795 = vmatpush1.msra.mxu0 0.0
      %796 = vmatprep.subr.mxu0 0.0
      %797 = vmatpush1.msra.mxu0 0.0
      %798 = vmatprep.subr.mxu0 0.0
      %799 = vmatpush1.msra.mxu0 0.0
      %800 = vmatprep.subr.mxu0 0.0
      %801 = vmatpush1.msra.mxu0 0.0
      %802 = vmatprep.subr.mxu0 0.0
      %803 = vmatpush1.msra.mxu0 0.0
      %804 = vmatprep.subr.mxu0 0.0
      %805 = vmatpush1.msra.mxu0 0.0
      %806 = vmatprep.subr.mxu0 0.0
      %807 = vmatpush1.msra.mxu0 0.0
      %808 = vmatprep.subr.mxu0 0.0
      %809 = vmatpush1.msra.mxu0 0.0
      %810 = vmatprep.subr.mxu0 0.0
      %811 = vmatpush1.msra.mxu0 0.0
      %812 = vmatprep.subr.mxu0 0.0
      %813 = vmatpush1.msra.mxu0 0.0
      %814 = vmatprep.subr.mxu0 0.0
      %815 = vmatpush1.msra.mxu0 0.0
      %816 = vmatprep.subr.mxu0 0.0
      %817 = vmatpush1.msra.mxu0 0.0
      %818 = vmatprep.subr.mxu0 0.0
      %819 = vmatpush1.msra.mxu0 0.0
      %820 = vmatprep.mubr.f32.mxu0 0.0
      %821 = vmatmul.mubr.f32.gmra.mrb[0].mxu0 %v754
      %v822 = vpop.f32.mrb[0].mxu0
      %v823 = vadd.f32 0.0, %v822
      %v824 = vpop.f32.mrb[0].mxu0
      %825 = vdwg.mxu0
      %v826 = vadd.f32 %v745, %v823
      %s827 = scalar_lea.vmem %s6, 3
      %v828 = vld [vmem:[%s827] sm:$0x1]
      %v830 = vlaneseq
      %v831 = vshrl.u32 %v830, 7
      %v832 = vsub.s32 0, %v831
      %v833 = vrot.slane %v828, %v832
      %v835 = vadd.f32 %v826, %v833
      %v836 = vxor.u32 %v304, 2147483648
      %v837 = vmul.f32 %v836, 1.442695
      %v838 = vpow.pop %v837
      %v839 = vadd.f32 %v838, 1.0
      %v840 = vrcp.pop %v839
      %v841 = vmul.f32 1.0, %v840
      %v842 = vxor.u32 %v481, 2147483648
      %v843 = vmul.f32 %v842, 1.442695
      %v844 = vpow.pop %v843
      %v845 = vadd.f32 %v844, 1.0
      %v846 = vrcp.pop %v845
      %v847 = vmul.f32 1.0, %v846
      %v848 = vxor.u32 %v658, 2147483648
      %v849 = vmul.f32 %v848, 1.442695
      %v850 = vpow.pop %v849
      %v851 = vadd.f32 %v850, 1.0
      %v852 = vrcp.pop %v851
      %v853 = vmul.f32 1.0, %v852
      %v854 = vtanh.pop %v835
      %v855 = vmul.f32 %v847, %v128
      %v856 = vmul.f32 %v841, %v854
      %v857 = vadd.f32 %v855, %v856
      %v858 = vtanh.pop %v857
      %v859 = vmul.f32 %v853, %v858
      %s860 = scalar_lea.vmem [#allocation13], %s129
      %861 = vst.msk [vmem:[%s860] sm:$0xff] %vm222, %v859
    $region66: #{tpu_custom_call.1} parent=1 // loop_footer
      %s126 = sadd.s32 1, %s122
    $region67: #{tpu_custom_call.1} parent=1 // loop_footer_branch
      %121 = sbr.rel target = $region63
    $region68: #{tpu_custom_call.1} parent=1 // loop_exit
      _
    %vm862 = vcmask 261120
    %863 = vst.msk [vmem:[#allocation14] sm:$0xff] %vm862, %v127
    %864 = vst.msk [vmem:[#allocation16] sm:$0xff] %vm862, %v128
    // Predicated region
    $region69: #{tpu_custom_call.1} parent=1 // pred_check
      _
    $region70: #{tpu_custom_call.1} parent=1 // pred_check_branch
      %866 = sbr.rel (0) target = $region72
    $region71: #{tpu_custom_call.1} parent=1 // pred_region
      %s868 = ssub.s32 1024, 1024
      %869 = vsyncadd [#allocation4], %s868
      %s870 = sshll.u32 [#allocation13], 4
      %s871 = int_to_ptr.vmem [resolvable:$true] %s870
      %876 = dma.vmem_to_hbm [thread:$0]  %s871, 1024, %s9, [#allocation4], 128, 128, 8
    $region72: #{tpu_custom_call.1} parent=1 // pred_fallthru
      _
    // Predicated region
    $region73: #{tpu_custom_call.1} parent=1 // pred_check
      _
    $region74: #{tpu_custom_call.1} parent=1 // pred_check_branch
      %878 = sbr.rel (0) target = $region76
    $region75: #{tpu_custom_call.1} parent=1 // pred_region
      %s880 = ssub.s32 128, 128
      %881 = vsyncadd [#allocation15], %s880
      %s883 = sshll.u32 [#allocation14], 4
      %s884 = int_to_ptr.vmem [resolvable:$true] %s883
      %886 = dma.vmem_to_hbm [thread:$0]  %s884, 128, %s10, [#allocation15]
    $region76: #{tpu_custom_call.1} parent=1 // pred_fallthru
      _
    // Predicated region
    $region77: #{tpu_custom_call.1} parent=1 // pred_check
      _
    $region78: #{tpu_custom_call.1} parent=1 // pred_check_branch
      %888 = sbr.rel (0) target = $region80
    $region79: #{tpu_custom_call.1} parent=1 // pred_region
      %s890 = ssub.s32 128, 128
      %891 = vsyncadd [#allocation15], %s890
      %s893 = sshll.u32 [#allocation16], 4
      %s894 = int_to_ptr.vmem [resolvable:$true] %s893
      %896 = dma.vmem_to_hbm [thread:$0]  %s894, 128, %s11, [#allocation15]
    $region80: #{tpu_custom_call.1} parent=1 // pred_fallthru
      _
    // Predicated region
    $region81: #{tpu_custom_call.1} parent=1 // pred_check
      _
    $region82: #{tpu_custom_call.1} parent=1 // pred_check_branch
      %898 = sbr.rel (0) target = $region84
    $region83: #{tpu_custom_call.1} parent=1 // pred_region
      %899 = dma.done [#allocation4], 1024
    $region84: #{tpu_custom_call.1} parent=1 // pred_fallthru
      _
    // Predicated region
    $region85: #{tpu_custom_call.1} parent=1 // pred_check
      _
    $region86: #{tpu_custom_call.1} parent=1 // pred_check_branch
      %901 = sbr.rel (0) target = $region88
    $region87: #{tpu_custom_call.1} parent=1 // pred_region
      %902 = dma.done [#allocation15], 128
    $region88: #{tpu_custom_call.1} parent=1 // pred_fallthru
      _
    // Predicated region
    $region89: #{tpu_custom_call.1} parent=1 // pred_check
      _
    $region90: #{tpu_custom_call.1} parent=1 // pred_check_branch
      %904 = sbr.rel (0) target = $region92
    $region91: #{tpu_custom_call.1} parent=1 // pred_region
      %905 = dma.done [#allocation15], 128
    $region92: #{tpu_custom_call.1} parent=1 // pred_fallthru
      _
    %906 = vsyncpa [#allocation3], 1
    %907 = vsyncpa [#allocation6], 1
    %908 = vsyncpa [#allocation9], 1
    %909 = vsyncpa [#allocation12], 1
    %910 = vsyncpa [#allocation4], 1
    %911 = vsyncpa [#allocation15], 1

</llo_original>
